<compile_context>
chip_gen: v5e
topology: v5e:2x2
jax: 0.10.0
libtpu: 0.0.40
codegen_flags: <defaults>
</compile_context>

<pallas_src>
import functools

import jax
import jax.numpy as jnp
from jax.experimental import pallas as pl
from jax.experimental.pallas import tpu as pltpu

_LANE = 128


def _rotary_kernel(params_ref, cos_ref, sin_ref, *, rows_per_lane_row):
    """Fill one (tile_rows, n_cols) block of the cos/sin tables.

    params_ref is a (2, n_cols) f32 table:
      row 0: inv_freq value for each output column (interleave-repeated, and
             tiled across the lane row in the flattened layout)
      row 1: precomputed phase offset  (col_seq_offset * inv_freq), zero in the
             non-flattened layout.
    freqs[r, c] = t(r) * params[0, c] + params[1, c]
    """
    tr, nc = cos_ref.shape
    i = pl.program_id(0)

    row = jax.lax.broadcasted_iota(jnp.int32, (tr, nc), 0)
    t = ((i * tr + row) * rows_per_lane_row).astype(jnp.float32)

    inv = params_ref[0:1, :]   # (1, nc) — broadcasts along sublanes
    off = params_ref[1:2, :]   # (1, nc)
    freqs = t * inv + off

    cos_ref[...] = jnp.cos(freqs).astype(cos_ref.dtype)
    sin_ref[...] = jnp.sin(freqs).astype(sin_ref.dtype)


def _build_col_params(dim, n_cols, flattened, base):
    """(2, n_cols) f32 table of per-column inv_freq and phase offsets."""
    inv_freq = 1.0 / (base ** (jnp.arange(0, dim, 2, dtype=jnp.float32) / dim))
    inv_full = jnp.repeat(inv_freq, 2)                      # (dim,) interleaved repeat
    if flattened:
        reps = n_cols // dim                                # sequence positions per lane row
        inv_row = jnp.tile(inv_full, reps)                  # (n_cols,)
        seq_off = jnp.repeat(jnp.arange(reps, dtype=jnp.float32), dim)
        phase_off = seq_off * inv_row
    else:
        inv_row = inv_full                                  # n_cols == dim here
        phase_off = jnp.zeros((n_cols,), jnp.float32)
    return jnp.stack([inv_row, phase_off], axis=0)          # (2, n_cols)


def rotary_cos_sin(seq_len, dim, *, base=10000.0, out_dtype=jnp.float32,
                   tile_rows_target=None):
    """Returns (cos, sin), each of shape (1, 1, seq_len, dim)."""
    assert dim % 2 == 0, "rotary dim must be even"

    # Lane-dense layout when dim < 128: compute (seq_len*dim/128, 128) and reshape.
    flattened = (dim < _LANE) and (_LANE % dim == 0) and ((seq_len * dim) % _LANE == 0)
    if flattened:
        n_cols = _LANE
        n_rows = (seq_len * dim) // _LANE
        rows_per_lane_row = _LANE // dim
    else:
        n_cols = dim
        n_rows = seq_len
        rows_per_lane_row = 1

    # Fat row tiles (~1 MiB per output block) for good HBM-writeback overlap;
    # multiple of 8 sublanes unless the block spans the whole array.
    bytes_per_row = n_cols * jnp.dtype(out_dtype).itemsize
    tile_rows = tile_rows_target or max(1, (1 << 20) // max(bytes_per_row, 1))
    tile_rows = min(tile_rows, 2048)
    if tile_rows >= n_rows:
        tile_rows = n_rows
    else:
        tile_rows = max(8, (tile_rows // 8) * 8)
        tile_rows = min(tile_rows, n_rows)

    params = _build_col_params(dim, n_cols, flattened, base)

    grid = (pl.cdiv(n_rows, tile_rows),)
    kernel = functools.partial(_rotary_kernel, rows_per_lane_row=rows_per_lane_row)
    out_spec = pl.BlockSpec((tile_rows, n_cols), lambda i: (i, 0))

    cos2d, sin2d = pl.pallas_call(
        kernel,
        out_shape=(
            jax.ShapeDtypeStruct((n_rows, n_cols), out_dtype),
            jax.ShapeDtypeStruct((n_rows, n_cols), out_dtype),
        ),
        grid=grid,
        in_specs=[pl.BlockSpec((2, n_cols), lambda i: (0, 0))],
        out_specs=(out_spec, out_spec),
        compiler_params=pltpu.CompilerParams(dimension_semantics=("parallel",)),
    )(params)

    cos = cos2d.reshape(seq_len, dim)
    sin = sin2d.reshape(seq_len, dim)
    return cos[None, None, :, :], sin[None, None, :, :]


def rotary_forward(x, dim, *, base=10000.0, seq_dim=1, out_dtype=jnp.float32):
    """Functional equivalent of Rotary.forward(x, seq_dim).

    The nn.Module's seq_len-keyed cache is stateful; under jit the tables are
    constant-folded / retraced per static seq_len, which serves the same purpose.
    """
    # TODO(synk): the stateful seq_len cache has no Pallas equivalent; rely on
    # jit constant-folding / per-shape retracing instead.
    seq_len = x.shape[seq_dim]
    return rotary_cos_sin(seq_len, dim, base=base, out_dtype=out_dtype)


def _reference(seq_len, dim, base=10000.0):
    inv_freq = 1.0 / (base ** (jnp.arange(0, dim, 2, dtype=jnp.float32) / dim))
    t = jnp.arange(seq_len, dtype=jnp.float32)
    freqs = t[:, None] * inv_freq[None, :]
    emb = jnp.repeat(freqs, 2, axis=-1)
    return jnp.cos(emb)[None, None, :, :], jnp.sin(emb)[None, None, :, :]


if __name__ == "__main__":
    key = jax.random.PRNGKey(0)

    # Small shapes consistent with the module (exercises the lane-dense dim<128 path).
    batch, seq, hidden = 2, 8, 32
    dim = hidden
    x = jax.random.normal(key, (batch, seq, hidden), dtype=jnp.float32)

    cos, sin = rotary_forward(x, dim, seq_dim=1)
    cos, sin = jax.block_until_ready((cos, sin))

    cos_ref, sin_ref = _reference(seq, dim)
    assert cos.shape == (1, 1, seq, dim) and sin.shape == (1, 1, seq, dim)
    assert jnp.allclose(cos, cos_ref, atol=1e-5, rtol=1e-5)
    assert jnp.allclose(sin, sin_ref, atol=1e-5, rtol=1e-5)

    # Larger shape exercising the multi-tile pipelined path (grid of 4 row tiles).
    seq_b, dim_b = 1024, 128
    cos_b, sin_b = rotary_cos_sin(seq_b, dim_b, tile_rows_target=256)
    cos_b, sin_b = jax.block_until_ready((cos_b, sin_b))
    cos_br, sin_br = _reference(seq_b, dim_b)
    # inv_freq now matches the reference exactly; only cos/sin approximation
    # ulps remain (phases up to ~1e3 before cos/sin).
    assert jnp.allclose(cos_b, cos_br, atol=1e-4)
    assert jnp.allclose(sin_b, sin_br, atol=1e-4)

    print("KERNEL_OK")
</pallas_src>

<mosaic_0001>
module attributes {stable_mosaic.version = 11 : i64} {
  func.func @_rotary_kernel(%arg0: i32, %arg1: memref<2x128xf32, #tpu.memory_space<vmem>>, %arg2: memref<2x128xf32, #tpu.memory_space<vmem>>, %arg3: memref<2x128xf32, #tpu.memory_space<vmem>>) attributes {dimension_semantics = [#tpu.dimension_semantics<parallel>], iteration_bounds = array<i64: 1>, scalar_prefetch = 0 : i64, scratch_operands = 0 : i64, tpu.core_type = #tpu.core_type<tc>, window_params = [{pipeline_mode = #tpu.pipeline_mode<synchronous>, transform_indices = @transform_0, window_bounds = array<i64: 2, 128>}, {transform_indices = @transform_1, window_bounds = array<i64: 2, 128>}, {transform_indices = @transform_2, window_bounds = array<i64: 2, 128>}]} {
    %0 = tpu.iota {dimensions = array<i32: 0>} : vector<2x128xi32>
    %c2_i32 = arith.constant 2 : i32
    %1 = arith.muli %arg0, %c2_i32 : i32
    %2 = vector.broadcast %1 : i32 to vector<2x128xi32>
    %3 = arith.addi %2, %0 : vector<2x128xi32>
    %c4_i32 = arith.constant 4 : i32
    %4 = vector.broadcast %c4_i32 : i32 to vector<2x128xi32>
    %5 = arith.muli %3, %4 : vector<2x128xi32>
    %6 = arith.sitofp %5 : vector<2x128xi32> to vector<2x128xf32>
    %c0 = arith.constant 0 : index
    %c0_0 = arith.constant 0 : index
    %7 = vector.load %arg1[%c0, %c0_0] : memref<2x128xf32, #tpu.memory_space<vmem>>, vector<1x128xf32>
    %c1 = arith.constant 1 : index
    %c0_1 = arith.constant 0 : index
    %8 = vector.load %arg1[%c1, %c0_1] : memref<2x128xf32, #tpu.memory_space<vmem>>, vector<1x128xf32>
    %9 = vector.broadcast %7 : vector<1x128xf32> to vector<2x128xf32>
    %10 = arith.mulf %6, %9 : vector<2x128xf32>
    %11 = vector.broadcast %8 : vector<1x128xf32> to vector<2x128xf32>
    %12 = arith.addf %10, %11 : vector<2x128xf32>
    %13 = math.cos %12 : vector<2x128xf32>
    %c0_2 = arith.constant 0 : index
    %c0_3 = arith.constant 0 : index
    %14 = vector.load %arg2[%c0_2, %c0_3] : memref<2x128xf32, #tpu.memory_space<vmem>>, vector<2x128xf32>
    tpu.vector_store %arg2[%c0_2, %c0_3], %13 {strides = array<i32>} : memref<2x128xf32, #tpu.memory_space<vmem>>, vector<2x128xf32>,
    %15 = math.sin %12 : vector<2x128xf32>
    %c0_4 = arith.constant 0 : index
    %c0_5 = arith.constant 0 : index
    %16 = vector.load %arg3[%c0_4, %c0_5] : memref<2x128xf32, #tpu.memory_space<vmem>>, vector<2x128xf32>
    tpu.vector_store %arg3[%c0_4, %c0_5], %15 {strides = array<i32>} : memref<2x128xf32, #tpu.memory_space<vmem>>, vector<2x128xf32>,
    return
  }
  func.func @transform_0(%arg0: i32) -> (i32, i32) {
    %c0_i32 = arith.constant 0 : i32
    %c0_i32_0 = arith.constant 0 : i32
    %c0_i32_1 = arith.constant 0 : i32
    return %c0_i32, %c0_i32_0 : i32, i32
  }
  func.func @transform_1(%arg0: i32) -> (i32, i32) {
    %c0_i32 = arith.constant 0 : i32
    %c0_i32_0 = arith.constant 0 : i32
    return %arg0, %c0_i32 : i32, i32
  }
  func.func @transform_2(%arg0: i32) -> (i32, i32) {
    %c0_i32 = arith.constant 0 : i32
    %c0_i32_0 = arith.constant 0 : i32
    return %arg0, %c0_i32 : i32, i32
  }
}

</mosaic_0001>

<llo_original>
// kernel: tpu_custom_call.1
$region0: #{tpu_custom_call.1}
  #allocation0 [shape = 'u32[]', space=smem, size = 0x4, offset = 0x4, fixed_abs, tag = 'smem constant byte address 0x4 - core index']
  #allocation1 [shape = 'u32[72,128]{1,0:T(1,128)}', space=vmem, size = 0x9000, scoped, tag = 'internal scratch']
  %s0 = inlined_call_operand.hbm [shape: f32[2,128], index: 0, kind: input, shape index: {}]
  %s1 = inlined_call_operand.hbm [shape: f32[2,128], index: 1, kind: output, shape index: {0}]
  %s2 = inlined_call_operand.hbm [shape: f32[2,128], index: 2, kind: output, shape index: {1}]
  %3 = xla_tuple %s1, %s2
  %s4 = sld [smem:[#allocation0]]
  $region26: #{tpu_custom_call.1} parent=0
    _
  %s6 = ssub.s32 1, %s4
  %s7 = scalar_select 0, %s6, %s4
  $region1: #{tpu_custom_call.1} parent=0
    #allocation2 [shape = 'u8[1024]{0}', space=vmem, size = 0x400, scoped, tag = 'input window, operand 0, single buffered']
    #allocation3 [shape = 's32[1]{0}', space=sflag, size = 0x4, scoped, tag = 'scoped memory for tpu_custom_call.1']
    #allocation4 [shape = 's32[1]{0}', space=sflag, size = 0x4, scoped, tag = 'scoped memory for tpu_custom_call.1']
    #allocation5 [shape = 'u8[1024]{0}', space=vmem, size = 0x400, scoped, tag = 'output window, operand 0, single buffered']
    #allocation6 [shape = 'u8[1024]{0}', space=vmem, size = 0x400, scoped, tag = 'output window, operand 1, single buffered']
    #allocation7 [shape = 's32[1]{0}', space=sflag, size = 0x4, scoped, tag = 'scoped memory for tpu_custom_call.1']
    %8 = vsyncpa [#allocation3], 0
    %9 = vsyncpa [#allocation4], 0
    %10 = vsyncpa [#allocation7], 0
    // Predicated region
    $region2: #{tpu_custom_call.1} parent=1 // pred_check
      _
    $region3: #{tpu_custom_call.1} parent=1 // pred_check_branch
      %12 = sbr.rel (0) target = $region5
    $region4: #{tpu_custom_call.1} parent=1 // pred_region
      %14 = vsyncadd [#allocation3], 0
      %s16 = sshll.u32 %s0, 4
      %s17 = int_to_ptr.hbm [resolvable:$true] %s16
      %s18 = sshll.u32 [#allocation2], 4
      %s19 = int_to_ptr.vmem [resolvable:$true] %s18
      %21 = dma.hbm_to_vmem [thread:$0]  %s17, 32, %s19, [#allocation3]
    $region5: #{tpu_custom_call.1} parent=1 // pred_fallthru
      _
    // Predicated region
    $region6: #{tpu_custom_call.1} parent=1 // pred_check
      _
    $region7: #{tpu_custom_call.1} parent=1 // pred_check_branch
      %23 = sbr.rel (0) target = $region9
    $region8: #{tpu_custom_call.1} parent=1 // pred_region
      %25 = dma.done [#allocation3], 32
    $region9: #{tpu_custom_call.1} parent=1 // pred_fallthru
      _
    %v26 = vlaneseq
    %v27 = vshrl.u32 %v26, 7
    %s28 = smul.u32 0, 2
    %v29 = vstv %s28
    %v30 = vadd.s32 %v29, %v27
    %v31 = vmul.u32 %v30, 4
    %v32 = vcvt.s32.f32 %v31
    %v33 = vld [vmem:[#allocation2] sm:$0x1]
    %v34 = vld [vmem:[#allocation2 + $0x1] sm:$0x1]
    %v35 = vperm.slane %v33, 0
    %v36 = vmul.f32 %v32, %v35
    %v37 = vperm.slane %v34, 0
    %v38 = vadd.f32 %v36, %v37
    %v39 = vand.u32 2147483647, %v38
    %vm40 = vcmp.le.f32.partialorder %v39, 0.7853982
    %vm41 = vcmp.lt.s32.totalorder %v38, 0
    %v42 = vand.u32 %v38, 2139095040
    %v43 = vshrl.u32 %v42, 23
    %v44 = vsub.s32 %v43, 127
    %v45 = vand.u32 2147483647, %v38
    %v46 = vand.u32 %v45, 8388607
    %v47 = vor.u32 %v46, 8388608
    %v48 = vsub.s32 0, %v47
    %v49 = vadd.s32 %v44, 1
    %vm50 = vcmp.gt.s32.totalorder %v49, 0
    %v51 = vsel %vm50, %v49, 0
    %v52 = vshrl.u32 %v51, 5
    %v53 = vand.u32 %v51, 31
    %v54 = vsub.s32 32, %v53
    %v55 = vshrl.u32 683565275, %v54
    %v56 = vshll.u32 683565275, %v53
    %v57 = vshrl.u32 2475754826, %v54
    %v58 = vor.u32 %v56, %v57
    %v59 = vshll.u32 2475754826, %v53
    %v60 = vshrl.u32 2131351028, %v54
    %v61 = vor.u32 %v59, %v60
    %v62 = vshll.u32 2131351028, %v53
    %v63 = vshrl.u32 2102212464, %v54
    %v64 = vor.u32 %v62, %v63
    %v65 = vshll.u32 2102212464, %v53
    %v66 = vshrl.u32 920167782, %v54
    %v67 = vor.u32 %v65, %v66
    %v68 = vshll.u32 920167782, %v53
    %v69 = vshrl.u32 1326507024, %v54
    %v70 = vor.u32 %v68, %v69
    %vm71 = vcmp.lt.s32.totalorder %v52, 1
    %vm72 = vcmp.lt.s32.totalorder %v52, 2
    %vm73 = vcmp.lt.s32.totalorder %v52, 3
    %vm74 = vcmp.lt.s32.totalorder %v52, 4
    %v75 = vsel %vm71, %v55, %v58
    %v76 = vsel %vm74, %v64, 2102212464
    %v77 = vsel %vm73, %v61, %v76
    %v78 = vsel %vm72, %v75, %v77
    %v79 = vsel %vm71, %v58, %v61
    %v80 = vsel %vm74, %v67, 920167782
    %v81 = vsel %vm73, %v64, %v80
    %v82 = vsel %vm72, %v79, %v81
    %v83 = vsel %vm71, %v61, %v64
    %v84 = vsel %vm74, %v70, 1326507024
    %v85 = vsel %vm73, %v67, %v84
    %v86 = vsel %vm72, %v83, %v85
    %v87 = vshll.u32 %v47, 8
    %v88 = vand.u32 %v87, 65535
    %v89 = vshrl.u32 %v87, 16
    %v90 = vand.u32 %v86, 65535
    %v91 = vshrl.u32 %v86, 16
    %v92 = vmul.u32 %v88, %v90
    %v93 = vmul.u32 %v88, %v91
    %v94 = vmul.u32 %v89, %v90
    %v95 = vmul.u32 %v89, %v91
    %v96 = vshll.u32 %v93, 16
    %v97 = vshrl.u32 %v93, 16
    %v98 = vshll.u32 %v94, 16
    %v99 = vshrl.u32 %v94, 16
    %vm100 = vc.u32 %v92, %v96
    %v101 = vsel %vm100, 1, 0
    %v102 = vadd.s32 %v92, %v96
    %v103 = vadd.s32 %v95, %v101
    %vm104 = vc.u32 %v102, %v98
    %v105 = vsel %vm104, 1, 0
    %v106 = vadd.s32 %v102, %v98
    %v107 = vadd.s32 %v103, %v105
    %v108 = vadd.s32 %v107, %v97
    %v109 = vadd.s32 %v108, %v99
    %v110 = vand.u32 %v87, 65535
    %v111 = vshrl.u32 %v87, 16
    %v112 = vand.u32 %v82, 65535
    %v113 = vshrl.u32 %v82, 16
    %v114 = vmul.u32 %v110, %v112
    %v115 = vmul.u32 %v110, %v113
    %v116 = vmul.u32 %v111, %v112
    %v117 = vmul.u32 %v111, %v113
    %v118 = vshll.u32 %v115, 16
    %v119 = vshrl.u32 %v115, 16
    %v120 = vshll.u32 %v116, 16
    %v121 = vshrl.u32 %v116, 16
    %vm122 = vc.u32 %v114, %v118
    %v123 = vsel %vm122, 1, 0
    %v124 = vadd.s32 %v114, %v118
    %v125 = vadd.s32 %v117, %v123
    %vm126 = vc.u32 %v124, %v120
    %v127 = vsel %vm126, 1, 0
    %v128 = vadd.s32 %v124, %v120
    %v129 = vadd.s32 %v125, %v127
    %v130 = vadd.s32 %v129, %v119
    %v131 = vadd.s32 %v130, %v121
    %v132 = vmul.u32 %v87, %v78
    %v133 = vadd.s32 %v109, %v128
    %vm134 = vc.u32 %v109, %v128
    %v135 = vadd.s32 %v131, 1
    %v136 = vsel %vm134, %v135, %v131
    %v137 = vadd.s32 %v132, %v136
    %v138 = vadd.s32 %v137, 536870912
    %v139 = vshrl.u32 %v138, 30
    %v140 = vshll.u32 %v139, 30
    %v141 = vsub.s32 %v137, %v140
    %vm142 = vcmp.lt.s32.totalorder %v141, 0
    %v143 = vsub.s32 0, %v141
    %v144 = vsel %vm142, %v143, %v141
    %v145 = vclz %v144
    %v146 = vsub.s32 %v145, 2
    %vm147 = vcmp.gt.s32.totalorder 0, %v146
    %v148 = vsel %vm147, 0, %v146
    %v149 = vsub.s32 32, %v148
    %v150 = vshll.u32 %v141, %v148
    %v151 = vshrl.u32 %v133, %v149
    %v152 = vor.u32 %v150, %v151
    %v153 = vsub.s32 4294967266, %v148
    %v154 = vadd.s32 %v153, 127
    %v155 = vshll.u32 %v154, 23
    %v156 = vor.u32 4788187, %v155
    %v157 = vand.u32 2147483647, %v156
    %v159 = vcvt.s32.f32 %v152
    %v160 = vmul.f32 %v159, %v157
    %v161 = vxor.u32 %v160, 2147483648
    %v162 = vsel %vm41, %v161, %v160
    %v163 = vsub.s32 4, %v139
    %v164 = vsel %vm41, %v163, %v139
    %v165 = vsel %vm40, %v38, %v162
    %v166 = vsel %vm40, 0, %v164
    %v167 = vmul.f32 %v165, %v165
    %v168 = vmul.f32 %v167, -0.001358992
    %v169 = vadd.f32 %v168, 0.041655596
    %v170 = vmul.f32 %v167, %v169
    %v171 = vadd.f32 %v170, -0.4999988
    %v172 = vmul.f32 %v167, %v171
    %v173 = vadd.f32 1.0, %v172
    %v174 = vmul.f32 %v165, %v165
    %v175 = vmul.f32 %v174, -0.00019511016
    %v176 = vadd.f32 %v175, 0.008332121
    %v177 = vmul.f32 %v174, %v176
    %v178 = vadd.f32 %v177, -0.16666654
    %v179 = vmul.f32 %v174, %v178
    %v180 = vadd.f32 %v179, 1.0
    %v181 = vmul.f32 %v180, %v165
    %vm182 = vweird.f32 %v38
    %v183 = vand.u32 %v166, 3
    %vm184 = vcmp.lt.s32.totalorder %v183, 2
    %vm185 = vcmp.eq.s32.totalorder %v183, 0
    %v186 = vxor.u32 %v181, 2147483648
    %v187 = vsel %vm185, %v173, %v186
    %vm188 = vcmp.eq.s32.totalorder %v183, 2
    %v189 = vxor.u32 %v173, 2147483648
    %v190 = vsel %vm188, %v189, %v181
    %v191 = vsel %vm184, %v187, %v190
    %v192 = vsel %vm182, nan, %v191
    %193 = vst [vmem:[#allocation5] sm:$0x3] %v192
    %v194 = vand.u32 2147483647, %v38
    %vm195 = vcmp.le.f32.partialorder %v194, 0.7853982
    %vm196 = vcmp.lt.s32.totalorder %v38, 0
    %v197 = vand.u32 %v38, 2139095040
    %v198 = vshrl.u32 %v197, 23
    %v199 = vsub.s32 %v198, 127
    %v200 = vand.u32 2147483647, %v38
    %v201 = vand.u32 %v200, 8388607
    %v202 = vor.u32 %v201, 8388608
    %v203 = vsub.s32 0, %v202
    %v204 = vadd.s32 %v199, 1
    %vm205 = vcmp.gt.s32.totalorder %v204, 0
    %v206 = vsel %vm205, %v204, 0
    %v207 = vshrl.u32 %v206, 5
    %v208 = vand.u32 %v206, 31
    %v209 = vsub.s32 32, %v208
    %v210 = vshrl.u32 683565275, %v209
    %v211 = vshll.u32 683565275, %v208
    %v212 = vshrl.u32 2475754826, %v209
    %v213 = vor.u32 %v211, %v212
    %v214 = vshll.u32 2475754826, %v208
    %v215 = vshrl.u32 2131351028, %v209
    %v216 = vor.u32 %v214, %v215
    %v217 = vshll.u32 2131351028, %v208
    %v218 = vshrl.u32 2102212464, %v209
    %v219 = vor.u32 %v217, %v218
    %v220 = vshll.u32 2102212464, %v208
    %v221 = vshrl.u32 920167782, %v209
    %v222 = vor.u32 %v220, %v221
    %v223 = vshll.u32 920167782, %v208
    %v224 = vshrl.u32 1326507024, %v209
    %v225 = vor.u32 %v223, %v224
    %vm226 = vcmp.lt.s32.totalorder %v207, 1
    %vm227 = vcmp.lt.s32.totalorder %v207, 2
    %vm228 = vcmp.lt.s32.totalorder %v207, 3
    %vm229 = vcmp.lt.s32.totalorder %v207, 4
    %v230 = vsel %vm226, %v210, %v213
    %v231 = vsel %vm229, %v219, 2102212464
    %v232 = vsel %vm228, %v216, %v231
    %v233 = vsel %vm227, %v230, %v232
    %v234 = vsel %vm226, %v213, %v216
    %v235 = vsel %vm229, %v222, 920167782
    %v236 = vsel %vm228, %v219, %v235
    %v237 = vsel %vm227, %v234, %v236
    %v238 = vsel %vm226, %v216, %v219
    %v239 = vsel %vm229, %v225, 1326507024
    %v240 = vsel %vm228, %v222, %v239
    %v241 = vsel %vm227, %v238, %v240
    %v242 = vshll.u32 %v202, 8
    %v243 = vand.u32 %v242, 65535
    %v244 = vshrl.u32 %v242, 16
    %v245 = vand.u32 %v241, 65535
    %v246 = vshrl.u32 %v241, 16
    %v247 = vmul.u32 %v243, %v245
    %v248 = vmul.u32 %v243, %v246
    %v249 = vmul.u32 %v244, %v245
    %v250 = vmul.u32 %v244, %v246
    %v251 = vshll.u32 %v248, 16
    %v252 = vshrl.u32 %v248, 16
    %v253 = vshll.u32 %v249, 16
    %v254 = vshrl.u32 %v249, 16
    %vm255 = vc.u32 %v247, %v251
    %v256 = vsel %vm255, 1, 0
    %v257 = vadd.s32 %v247, %v251
    %v258 = vadd.s32 %v250, %v256
    %vm259 = vc.u32 %v257, %v253
    %v260 = vsel %vm259, 1, 0
    %v261 = vadd.s32 %v257, %v253
    %v262 = vadd.s32 %v258, %v260
    %v263 = vadd.s32 %v262, %v252
    %v264 = vadd.s32 %v263, %v254
    %v265 = vand.u32 %v242, 65535
    %v266 = vshrl.u32 %v242, 16
    %v267 = vand.u32 %v237, 65535
    %v268 = vshrl.u32 %v237, 16
    %v269 = vmul.u32 %v265, %v267
    %v270 = vmul.u32 %v265, %v268
    %v271 = vmul.u32 %v266, %v267
    %v272 = vmul.u32 %v266, %v268
    %v273 = vshll.u32 %v270, 16
    %v274 = vshrl.u32 %v270, 16
    %v275 = vshll.u32 %v271, 16
    %v276 = vshrl.u32 %v271, 16
    %vm277 = vc.u32 %v269, %v273
    %v278 = vsel %vm277, 1, 0
    %v279 = vadd.s32 %v269, %v273
    %v280 = vadd.s32 %v272, %v278
    %vm281 = vc.u32 %v279, %v275
    %v282 = vsel %vm281, 1, 0
    %v283 = vadd.s32 %v279, %v275
    %v284 = vadd.s32 %v280, %v282
    %v285 = vadd.s32 %v284, %v274
    %v286 = vadd.s32 %v285, %v276
    %v287 = vmul.u32 %v242, %v233
    %v288 = vadd.s32 %v264, %v283
    %vm289 = vc.u32 %v264, %v283
    %v290 = vadd.s32 %v286, 1
    %v291 = vsel %vm289, %v290, %v286
    %v292 = vadd.s32 %v287, %v291
    %v293 = vadd.s32 %v292, 536870912
    %v294 = vshrl.u32 %v293, 30
    %v295 = vshll.u32 %v294, 30
    %v296 = vsub.s32 %v292, %v295
    %vm297 = vcmp.lt.s32.totalorder %v296, 0
    %v298 = vsub.s32 0, %v296
    %v299 = vsel %vm297, %v298, %v296
    %v300 = vclz %v299
    %v301 = vsub.s32 %v300, 2
    %vm302 = vcmp.gt.s32.totalorder 0, %v301
    %v303 = vsel %vm302, 0, %v301
    %v304 = vsub.s32 32, %v303
    %v305 = vshll.u32 %v296, %v303
    %v306 = vshrl.u32 %v288, %v304
    %v307 = vor.u32 %v305, %v306
    %v308 = vsub.s32 4294967266, %v303
    %v309 = vadd.s32 %v308, 127
    %v310 = vshll.u32 %v309, 23
    %v311 = vor.u32 4788187, %v310
    %v312 = vand.u32 2147483647, %v311
    %v314 = vcvt.s32.f32 %v307
    %v315 = vmul.f32 %v314, %v312
    %v316 = vxor.u32 %v315, 2147483648
    %v317 = vsel %vm196, %v316, %v315
    %v318 = vsub.s32 4, %v294
    %v319 = vsel %vm196, %v318, %v294
    %v320 = vsel %vm195, %v38, %v317
    %v321 = vsel %vm195, 0, %v319
    %v322 = vmul.f32 %v320, %v320
    %v323 = vmul.f32 %v322, -0.001358992
    %v324 = vadd.f32 %v323, 0.041655596
    %v325 = vmul.f32 %v322, %v324
    %v326 = vadd.f32 %v325, -0.4999988
    %v327 = vmul.f32 %v322, %v326
    %v328 = vadd.f32 1.0, %v327
    %v329 = vmul.f32 %v320, %v320
    %v330 = vmul.f32 %v329, -0.00019511016
    %v331 = vadd.f32 %v330, 0.008332121
    %v332 = vmul.f32 %v329, %v331
    %v333 = vadd.f32 %v332, -0.16666654
    %v334 = vmul.f32 %v329, %v333
    %v335 = vadd.f32 %v334, 1.0
    %v336 = vmul.f32 %v335, %v320
    %vm337 = vweird.f32 %v38
    %v338 = vadd.s32 %v321, 3
    %v339 = vand.u32 %v338, 3
    %vm340 = vcmp.lt.s32.totalorder %v339, 2
    %vm341 = vcmp.eq.s32.totalorder %v339, 0
    %v342 = vxor.u32 %v336, 2147483648
    %v343 = vsel %vm341, %v328, %v342
    %vm344 = vcmp.eq.s32.totalorder %v339, 2
    %v345 = vxor.u32 %v328, 2147483648
    %v346 = vsel %vm344, %v345, %v336
    %v347 = vsel %vm340, %v343, %v346
    %v348 = vsel %vm337, nan, %v347
    %349 = vst [vmem:[#allocation6] sm:$0x3] %v348
    // Predicated region
    $region10: #{tpu_custom_call.1} parent=1 // pred_check
      _
    $region11: #{tpu_custom_call.1} parent=1 // pred_check_branch
      %351 = sbr.rel (0) target = $region13
    $region12: #{tpu_custom_call.1} parent=1 // pred_region
      %353 = vsyncadd [#allocation4], 0
      %s355 = sshll.u32 [#allocation5], 4
      %s356 = int_to_ptr.vmem [resolvable:$true] %s355
      %s357 = sshll.u32 %s1, 4
      %s358 = int_to_ptr.hbm [resolvable:$true] %s357
      %360 = dma.vmem_to_hbm [thread:$0]  %s356, 32, %s358, [#allocation4]
    $region13: #{tpu_custom_call.1} parent=1 // pred_fallthru
      _
    // Predicated region
    $region14: #{tpu_custom_call.1} parent=1 // pred_check
      _
    $region15: #{tpu_custom_call.1} parent=1 // pred_check_branch
      %362 = sbr.rel (0) target = $region17
    $region16: #{tpu_custom_call.1} parent=1 // pred_region
      %364 = vsyncadd [#allocation7], 0
      %s366 = sshll.u32 [#allocation6], 4
      %s367 = int_to_ptr.vmem [resolvable:$true] %s366
      %s368 = sshll.u32 %s2, 4
      %s369 = int_to_ptr.hbm [resolvable:$true] %s368
      %371 = dma.vmem_to_hbm [thread:$0]  %s367, 32, %s369, [#allocation7]
    $region17: #{tpu_custom_call.1} parent=1 // pred_fallthru
      _
    // Predicated region
    $region18: #{tpu_custom_call.1} parent=1 // pred_check
      _
    $region19: #{tpu_custom_call.1} parent=1 // pred_check_branch
      %373 = sbr.rel (0) target = $region21
    $region20: #{tpu_custom_call.1} parent=1 // pred_region
      %375 = dma.done [#allocation4], 32
    $region21: #{tpu_custom_call.1} parent=1 // pred_fallthru
      _
    // Predicated region
    $region22: #{tpu_custom_call.1} parent=1 // pred_check
      _
    $region23: #{tpu_custom_call.1} parent=1 // pred_check_branch
      %377 = sbr.rel (0) target = $region25
    $region24: #{tpu_custom_call.1} parent=1 // pred_region
      %379 = dma.done [#allocation7], 32
    $region25: #{tpu_custom_call.1} parent=1 // pred_fallthru
      _
    %380 = vsyncpa [#allocation3], 1
    %381 = vsyncpa [#allocation4], 1
    %382 = vsyncpa [#allocation7], 1

</llo_original>
